<compile_context>
chip_gen: v5e
topology: v5e:2x2
jax: 0.10.0
libtpu: 0.0.40
codegen_flags: <defaults>
</compile_context>

<pallas_src>
import numpy as np
import jax
import jax.numpy as jnp
from jax.experimental import pallas as pl
from jax.experimental.pallas import tpu as pltpu

NUM_CLASSES = 10
CONV_OUT = 128
FC1_OUT = 256
BN_EPS = 1e-5
NC_PAD = 128        # lane-padded logits width


def _round_up(v, m):
    return (v + m - 1) // m * m


def inception_aux_kernel(xw_ref, wc_ref, cshift_ref, w1_ref, b1_ref,
                         w2_ref, b2_ref, out_ref, y_scr):
    """One batch tile of the InceptionAux head.

    xw_ref : (4, 4, TB, Cp) bf16 -- (pool-window pixel, pooled spatial pos hw, batch, in-ch)
    wc_ref : (Cp, 128)      bf16 -- 1x1-conv weight with BN scale and the 1/4 pool factor folded in
    cshift : (1, 128)       f32  -- folded conv-bias / BN shift
    w1_ref : (512, 256)     bf16 -- fc1 weight, rows ordered hw*128 + c
    b1_ref : (1, 256)       f32
    w2_ref : (256, 128)     bf16 -- fc2 weight, lane-padded to 128 classes
    b2_ref : (1, 128)       f32
    out_ref: (TB, 128)      f32
    y_scr  : (TB, 512)      bf16 -- flattened conv/BN/ReLU activations, cols hw*128 + c
    """
    conv_out = wc_ref.shape[1]

    # AvgPool2d(2,2): sum the 4 window pixels (leading-axis slices -> pure VPU adds, no
    # pooling matrix, no MXU pass).  1x1 conv + bias + BatchNorm(eval) collapse to one
    # bf16 matmul + per-channel f32 shift.  Results land in 128-lane-aligned column
    # blocks of the scratch so fc1 becomes a single K=512 matmul.
    for hw in range(4):  # 2x2 pooled spatial positions (static, fully aligned slices)
        p = xw_ref[0, hw] + xw_ref[1, hw] + xw_ref[2, hw] + xw_ref[3, hw]   # (TB, Cp) bf16
        y = jnp.dot(p, wc_ref[...], preferred_element_type=jnp.float32) + cshift_ref[...]
        y_scr[:, hw * conv_out:(hw + 1) * conv_out] = jnp.maximum(y, 0.0).astype(jnp.bfloat16)

    # TODO(synk): F.dropout(p=0.5) in training mode not implemented; eval semantics (identity).

    # fc1 over the flattened (c, h, w) features: single (TB, 512) @ (512, 256) MXU pass.
    h1 = jnp.dot(y_scr[...], w1_ref[...], preferred_element_type=jnp.float32) + b1_ref[...]
    h1 = jnp.maximum(h1, 0.0).astype(jnp.bfloat16)

    # fc2 -- output lane-padded to 128 columns so the store path is dense.
    out_ref[...] = jnp.dot(h1, w2_ref[...], preferred_element_type=jnp.float32) + b2_ref[...]


def make_params(key, in_channels, num_classes):
    ks = jax.random.split(key, 8)
    s = 0.1
    return {
        "conv_w": jax.random.normal(ks[0], (CONV_OUT, in_channels)) * s,      # (O, C) from (O,C,1,1)
        "conv_b": jax.random.normal(ks[1], (CONV_OUT,)) * s,
        "bn_gamma": 1.0 + 0.1 * jax.random.normal(ks[2], (CONV_OUT,)),
        "bn_beta": 0.1 * jax.random.normal(ks[3], (CONV_OUT,)),
        "bn_mean": 0.1 * jax.random.normal(ks[4], (CONV_OUT,)),
        "bn_var": 1.0 + 0.5 * jax.nn.sigmoid(jax.random.normal(ks[5], (CONV_OUT,))),
        "fc1_w": jax.random.normal(ks[6], (FC1_OUT, 4 * CONV_OUT)) * 0.05,    # PyTorch (out, in)
        "fc1_b": jnp.zeros((FC1_OUT,)) + 0.01,
        "fc2_w": jax.random.normal(ks[7], (num_classes, FC1_OUT)) * 0.05,
        "fc2_b": jnp.zeros((num_classes,)) + 0.02,
    }


def inception_aux_forward(x, params, num_classes=NUM_CLASSES):
    N, C, H, W = x.shape
    assert H == 4 and W == 4, "InceptionAux fc1 expects 2*2*128 -> input spatial must be 4x4"
    assert num_classes <= NC_PAD

    # ---- batch / channel padding to (sublane, lane)-friendly sizes ----
    if N > 128:
        tb = 128                          # batch tile; grid pipelines DMA with compute
        n_pad = _round_up(N, tb)
    else:
        n_pad = _round_up(N, 16)          # 16 sublanes (bf16 packing), single grid step
        tb = n_pad
    c_pad = _round_up(C, 128)

    # ---- layout plumbing (wrapper only): (N,C,4,4) -> (window_pix, hw, n, c) ----
    xw = x.reshape(N, C, 2, 2, 2, 2)            # (n, c, ho, dh, wo, dw)
    xw = xw.transpose(3, 5, 2, 4, 0, 1)         # (dh, dw, ho, wo, n, c)
    xw = xw.reshape(4, 4, N, C)                 # (window pixel, hw = ho*2+wo, n, c)
    xw = jnp.pad(xw, ((0, 0), (0, 0), (0, n_pad - N), (0, c_pad - C))).astype(jnp.bfloat16)

    # ---- constant folding: pool 1/4 + conv bias + BatchNorm(eval) into the conv weight ----
    scale = params["bn_gamma"] * jax.lax.rsqrt(params["bn_var"] + BN_EPS)        # (128,)
    wc = params["conv_w"].T * scale[None, :] * 0.25                              # (C, 128)
    wc = jnp.pad(wc, ((0, c_pad - C), (0, 0))).astype(jnp.bfloat16)
    cshift = params["bn_beta"] + (params["conv_b"] - params["bn_mean"]) * scale
    cshift = cshift.reshape(1, CONV_OUT).astype(jnp.float32)

    # fc1 weight: PyTorch (256, 512) with input index c*4 + hw  ->  rows ordered hw*128 + c
    w1 = params["fc1_w"].reshape(FC1_OUT, CONV_OUT, 4).transpose(2, 1, 0)
    w1 = w1.reshape(4 * CONV_OUT, FC1_OUT).astype(jnp.bfloat16)
    b1 = params["fc1_b"].reshape(1, FC1_OUT).astype(jnp.float32)

    # fc2 weight / bias: lane-pad the class dimension to 128
    w2 = jnp.pad(params["fc2_w"].T, ((0, 0), (0, NC_PAD - num_classes))).astype(jnp.bfloat16)
    b2 = jnp.pad(params["fc2_b"], (0, NC_PAD - num_classes)).reshape(1, NC_PAD).astype(jnp.float32)

    out = pl.pallas_call(
        inception_aux_kernel,
        out_shape=jax.ShapeDtypeStruct((n_pad, NC_PAD), jnp.float32),
        grid_spec=pltpu.PrefetchScalarGridSpec(
            num_scalar_prefetch=0,
            grid=(n_pad // tb,),
            in_specs=[
                pl.BlockSpec((4, 4, tb, c_pad), lambda i: (0, 0, i, 0)),   # xw (batch-tiled)
                pl.BlockSpec((c_pad, CONV_OUT), lambda i: (0, 0)),          # wc (resident)
                pl.BlockSpec((1, CONV_OUT), lambda i: (0, 0)),              # cshift
                pl.BlockSpec((4 * CONV_OUT, FC1_OUT), lambda i: (0, 0)),    # w1
                pl.BlockSpec((1, FC1_OUT), lambda i: (0, 0)),               # b1
                pl.BlockSpec((FC1_OUT, NC_PAD), lambda i: (0, 0)),          # w2
                pl.BlockSpec((1, NC_PAD), lambda i: (0, 0)),                # b2
            ],
            out_specs=pl.BlockSpec((tb, NC_PAD), lambda i: (i, 0)),
            scratch_shapes=[pltpu.VMEM((tb, 4 * CONV_OUT), jnp.bfloat16)],
        ),
        compiler_params=pltpu.CompilerParams(dimension_semantics=("parallel",)),
    )(xw, wc, cshift, w1, b1, w2, b2)

    return out[:N, :num_classes]


def reference_forward(x, params):
    """Pure-JAX mirror of the PyTorch forward (eval mode), for validation."""
    N, C, H, W = x.shape
    pooled = x.reshape(N, C, 2, 2, 2, 2).mean(axis=(3, 5))             # AvgPool2d(2,2)
    y = jnp.einsum("nchw,oc->nohw", pooled, params["conv_w"]) + params["conv_b"][None, :, None, None]
    y = (y - params["bn_mean"][None, :, None, None]) / jnp.sqrt(params["bn_var"][None, :, None, None] + BN_EPS)
    y = y * params["bn_gamma"][None, :, None, None] + params["bn_beta"][None, :, None, None]
    y = jnp.maximum(y, 0.0)
    f = y.reshape(N, -1)                                               # flatten (c, h, w)
    h1 = jnp.maximum(f @ params["fc1_w"].T + params["fc1_b"], 0.0)
    return h1 @ params["fc2_w"].T + params["fc2_b"]


if __name__ == "__main__":
    key = jax.random.PRNGKey(0)
    kx, kp = jax.random.split(key)

    N, C = 2, 4                       # batch=2, in_channels=4, spatial 4x4 (required by fc1)
    x = jax.random.normal(kx, (N, C, 4, 4), dtype=jnp.float32)
    params = make_params(kp, C, NUM_CLASSES)

    out = inception_aux_forward(x, params, NUM_CLASSES)
    out = jax.block_until_ready(out)

    ref = reference_forward(x, params)
    np.testing.assert_allclose(np.asarray(out), np.asarray(ref), rtol=5e-2, atol=5e-2)

    print("KERNEL_OK")
</pallas_src>

<mosaic_0001>
module attributes {stable_mosaic.version = 11 : i64} {
  func.func @inception_aux_kernel(%arg0: i32, %arg1: memref<4x4x16x128xbf16, #tpu.memory_space<vmem>>, %arg2: memref<128x128xbf16, #tpu.memory_space<vmem>>, %arg3: memref<1x128xf32, #tpu.memory_space<vmem>>, %arg4: memref<512x256xbf16, #tpu.memory_space<vmem>>, %arg5: memref<1x256xf32, #tpu.memory_space<vmem>>, %arg6: memref<256x128xbf16, #tpu.memory_space<vmem>>, %arg7: memref<1x128xf32, #tpu.memory_space<vmem>>, %arg8: memref<16x128xf32, #tpu.memory_space<vmem>>, %arg9: memref<16x512xbf16, #tpu.memory_space<vmem>>) attributes {dimension_semantics = [#tpu.dimension_semantics<parallel>], iteration_bounds = array<i64: 1>, scalar_prefetch = 0 : i64, scratch_operands = 1 : i64, tpu.core_type = #tpu.core_type<tc>, window_params = [{transform_indices = @transform_0, window_bounds = array<i64: 4, 4, 16, 128>}, {pipeline_mode = #tpu.pipeline_mode<synchronous>, transform_indices = @transform_1, window_bounds = array<i64: 128, 128>}, {pipeline_mode = #tpu.pipeline_mode<synchronous>, transform_indices = @transform_2, window_bounds = array<i64: 1, 128>}, {pipeline_mode = #tpu.pipeline_mode<synchronous>, transform_indices = @transform_3, window_bounds = array<i64: 512, 256>}, {pipeline_mode = #tpu.pipeline_mode<synchronous>, transform_indices = @transform_4, window_bounds = array<i64: 1, 256>}, {pipeline_mode = #tpu.pipeline_mode<synchronous>, transform_indices = @transform_5, window_bounds = array<i64: 256, 128>}, {pipeline_mode = #tpu.pipeline_mode<synchronous>, transform_indices = @transform_6, window_bounds = array<i64: 1, 128>}, {transform_indices = @transform_7, window_bounds = array<i64: 16, 128>}]} {
    %c0 = arith.constant 0 : index
    %c0_0 = arith.constant 0 : index
    %c0_1 = arith.constant 0 : index
    %c0_2 = arith.constant 0 : index
    %0 = vector.load %arg1[%c0, %c0_0, %c0_1, %c0_2] : memref<4x4x16x128xbf16, #tpu.memory_space<vmem>>, vector<1x1x16x128xbf16>
    %1 = vector.shape_cast %0 : vector<1x1x16x128xbf16> to vector<16x128xbf16>
    %c1 = arith.constant 1 : index
    %c0_3 = arith.constant 0 : index
    %c0_4 = arith.constant 0 : index
    %c0_5 = arith.constant 0 : index
    %2 = vector.load %arg1[%c1, %c0_3, %c0_4, %c0_5] : memref<4x4x16x128xbf16, #tpu.memory_space<vmem>>, vector<1x1x16x128xbf16>
    %3 = vector.shape_cast %2 : vector<1x1x16x128xbf16> to vector<16x128xbf16>
    %4 = arith.addf %1, %3 : vector<16x128xbf16>
    %c2 = arith.constant 2 : index
    %c0_6 = arith.constant 0 : index
    %c0_7 = arith.constant 0 : index
    %c0_8 = arith.constant 0 : index
    %5 = vector.load %arg1[%c2, %c0_6, %c0_7, %c0_8] : memref<4x4x16x128xbf16, #tpu.memory_space<vmem>>, vector<1x1x16x128xbf16>
    %6 = vector.shape_cast %5 : vector<1x1x16x128xbf16> to vector<16x128xbf16>
    %7 = arith.addf %4, %6 : vector<16x128xbf16>
    %c3 = arith.constant 3 : index
    %c0_9 = arith.constant 0 : index
    %c0_10 = arith.constant 0 : index
    %c0_11 = arith.constant 0 : index
    %8 = vector.load %arg1[%c3, %c0_9, %c0_10, %c0_11] : memref<4x4x16x128xbf16, #tpu.memory_space<vmem>>, vector<1x1x16x128xbf16>
    %9 = vector.shape_cast %8 : vector<1x1x16x128xbf16> to vector<16x128xbf16>
    %10 = arith.addf %7, %9 : vector<16x128xbf16>
    %c0_12 = arith.constant 0 : index
    %c0_13 = arith.constant 0 : index
    %11 = vector.load %arg2[%c0_12, %c0_13] : memref<128x128xbf16, #tpu.memory_space<vmem>>, vector<128x128xbf16>
    %cst = arith.constant dense<0.000000e+00> : vector<16x128xf32>
    %12 = tpu.matmul %10, %11, %cst {dimension_numbers = #tpu.dot_dimension_numbers<[1], [0], [0], [1], [0, 0, 1, 1], [], []>} : vector<16x128xbf16>, vector<128x128xbf16>, vector<16x128xf32> -> vector<16x128xf32>
    %c0_14 = arith.constant 0 : index
    %c0_15 = arith.constant 0 : index
    %13 = vector.load %arg3[%c0_14, %c0_15] : memref<1x128xf32, #tpu.memory_space<vmem>>, vector<1x128xf32>
    %14 = vector.broadcast %13 : vector<1x128xf32> to vector<16x128xf32>
    %15 = arith.addf %12, %14 : vector<16x128xf32>
    %cst_16 = arith.constant 0.000000e+00 : f32
    %16 = vector.broadcast %cst_16 : f32 to vector<16x128xf32>
    %17 = arith.maximumf %15, %16 : vector<16x128xf32>
    %18 = arith.truncf %17 : vector<16x128xf32> to vector<16x128xbf16>
    %c0_17 = arith.constant 0 : index
    %c0_18 = arith.constant 0 : index
    %19 = vector.load %arg9[%c0_17, %c0_18] : memref<16x512xbf16, #tpu.memory_space<vmem>>, vector<16x128xbf16>
    tpu.vector_store %arg9[%c0_17, %c0_18], %18 {strides = array<i32>} : memref<16x512xbf16, #tpu.memory_space<vmem>>, vector<16x128xbf16>,
    %c0_19 = arith.constant 0 : index
    %c1_20 = arith.constant 1 : index
    %c0_21 = arith.constant 0 : index
    %c0_22 = arith.constant 0 : index
    %20 = vector.load %arg1[%c0_19, %c1_20, %c0_21, %c0_22] : memref<4x4x16x128xbf16, #tpu.memory_space<vmem>>, vector<1x1x16x128xbf16>
    %21 = vector.shape_cast %20 : vector<1x1x16x128xbf16> to vector<16x128xbf16>
    %c1_23 = arith.constant 1 : index
    %c1_24 = arith.constant 1 : index
    %c0_25 = arith.constant 0 : index
    %c0_26 = arith.constant 0 : index
    %22 = vector.load %arg1[%c1_23, %c1_24, %c0_25, %c0_26] : memref<4x4x16x128xbf16, #tpu.memory_space<vmem>>, vector<1x1x16x128xbf16>
    %23 = vector.shape_cast %22 : vector<1x1x16x128xbf16> to vector<16x128xbf16>
    %24 = arith.addf %21, %23 : vector<16x128xbf16>
    %c2_27 = arith.constant 2 : index
    %c1_28 = arith.constant 1 : index
    %c0_29 = arith.constant 0 : index
    %c0_30 = arith.constant 0 : index
    %25 = vector.load %arg1[%c2_27, %c1_28, %c0_29, %c0_30] : memref<4x4x16x128xbf16, #tpu.memory_space<vmem>>, vector<1x1x16x128xbf16>
    %26 = vector.shape_cast %25 : vector<1x1x16x128xbf16> to vector<16x128xbf16>
    %27 = arith.addf %24, %26 : vector<16x128xbf16>
    %c3_31 = arith.constant 3 : index
    %c1_32 = arith.constant 1 : index
    %c0_33 = arith.constant 0 : index
    %c0_34 = arith.constant 0 : index
    %28 = vector.load %arg1[%c3_31, %c1_32, %c0_33, %c0_34] : memref<4x4x16x128xbf16, #tpu.memory_space<vmem>>, vector<1x1x16x128xbf16>
    %29 = vector.shape_cast %28 : vector<1x1x16x128xbf16> to vector<16x128xbf16>
    %30 = arith.addf %27, %29 : vector<16x128xbf16>
    %c0_35 = arith.constant 0 : index
    %c0_36 = arith.constant 0 : index
    %31 = vector.load %arg2[%c0_35, %c0_36] : memref<128x128xbf16, #tpu.memory_space<vmem>>, vector<128x128xbf16>
    %cst_37 = arith.constant dense<0.000000e+00> : vector<16x128xf32>
    %32 = tpu.matmul %30, %31, %cst_37 {dimension_numbers = #tpu.dot_dimension_numbers<[1], [0], [0], [1], [0, 0, 1, 1], [], []>} : vector<16x128xbf16>, vector<128x128xbf16>, vector<16x128xf32> -> vector<16x128xf32>
    %c0_38 = arith.constant 0 : index
    %c0_39 = arith.constant 0 : index
    %33 = vector.load %arg3[%c0_38, %c0_39] : memref<1x128xf32, #tpu.memory_space<vmem>>, vector<1x128xf32>
    %34 = vector.broadcast %33 : vector<1x128xf32> to vector<16x128xf32>
    %35 = arith.addf %32, %34 : vector<16x128xf32>
    %cst_40 = arith.constant 0.000000e+00 : f32
    %36 = vector.broadcast %cst_40 : f32 to vector<16x128xf32>
    %37 = arith.maximumf %35, %36 : vector<16x128xf32>
    %38 = arith.truncf %37 : vector<16x128xf32> to vector<16x128xbf16>
    %c0_41 = arith.constant 0 : index
    %c128 = arith.constant 128 : index
    %39 = vector.load %arg9[%c0_41, %c128] : memref<16x512xbf16, #tpu.memory_space<vmem>>, vector<16x128xbf16>
    tpu.vector_store %arg9[%c0_41, %c128], %38 {strides = array<i32>} : memref<16x512xbf16, #tpu.memory_space<vmem>>, vector<16x128xbf16>,
    %c0_42 = arith.constant 0 : index
    %c2_43 = arith.constant 2 : index
    %c0_44 = arith.constant 0 : index
    %c0_45 = arith.constant 0 : index
    %40 = vector.load %arg1[%c0_42, %c2_43, %c0_44, %c0_45] : memref<4x4x16x128xbf16, #tpu.memory_space<vmem>>, vector<1x1x16x128xbf16>
    %41 = vector.shape_cast %40 : vector<1x1x16x128xbf16> to vector<16x128xbf16>
    %c1_46 = arith.constant 1 : index
    %c2_47 = arith.constant 2 : index
    %c0_48 = arith.constant 0 : index
    %c0_49 = arith.constant 0 : index
    %42 = vector.load %arg1[%c1_46, %c2_47, %c0_48, %c0_49] : memref<4x4x16x128xbf16, #tpu.memory_space<vmem>>, vector<1x1x16x128xbf16>
    %43 = vector.shape_cast %42 : vector<1x1x16x128xbf16> to vector<16x128xbf16>
    %44 = arith.addf %41, %43 : vector<16x128xbf16>
    %c2_50 = arith.constant 2 : index
    %c2_51 = arith.constant 2 : index
    %c0_52 = arith.constant 0 : index
    %c0_53 = arith.constant 0 : index
    %45 = vector.load %arg1[%c2_50, %c2_51, %c0_52, %c0_53] : memref<4x4x16x128xbf16, #tpu.memory_space<vmem>>, vector<1x1x16x128xbf16>
    %46 = vector.shape_cast %45 : vector<1x1x16x128xbf16> to vector<16x128xbf16>
    %47 = arith.addf %44, %46 : vector<16x128xbf16>
    %c3_54 = arith.constant 3 : index
    %c2_55 = arith.constant 2 : index
    %c0_56 = arith.constant 0 : index
    %c0_57 = arith.constant 0 : index
    %48 = vector.load %arg1[%c3_54, %c2_55, %c0_56, %c0_57] : memref<4x4x16x128xbf16, #tpu.memory_space<vmem>>, vector<1x1x16x128xbf16>
    %49 = vector.shape_cast %48 : vector<1x1x16x128xbf16> to vector<16x128xbf16>
    %50 = arith.addf %47, %49 : vector<16x128xbf16>
    %c0_58 = arith.constant 0 : index
    %c0_59 = arith.constant 0 : index
    %51 = vector.load %arg2[%c0_58, %c0_59] : memref<128x128xbf16, #tpu.memory_space<vmem>>, vector<128x128xbf16>
    %cst_60 = arith.constant dense<0.000000e+00> : vector<16x128xf32>
    %52 = tpu.matmul %50, %51, %cst_60 {dimension_numbers = #tpu.dot_dimension_numbers<[1], [0], [0], [1], [0, 0, 1, 1], [], []>} : vector<16x128xbf16>, vector<128x128xbf16>, vector<16x128xf32> -> vector<16x128xf32>
    %c0_61 = arith.constant 0 : index
    %c0_62 = arith.constant 0 : index
    %53 = vector.load %arg3[%c0_61, %c0_62] : memref<1x128xf32, #tpu.memory_space<vmem>>, vector<1x128xf32>
    %54 = vector.broadcast %53 : vector<1x128xf32> to vector<16x128xf32>
    %55 = arith.addf %52, %54 : vector<16x128xf32>
    %cst_63 = arith.constant 0.000000e+00 : f32
    %56 = vector.broadcast %cst_63 : f32 to vector<16x128xf32>
    %57 = arith.maximumf %55, %56 : vector<16x128xf32>
    %58 = arith.truncf %57 : vector<16x128xf32> to vector<16x128xbf16>
    %c0_64 = arith.constant 0 : index
    %c256 = arith.constant 256 : index
    %59 = vector.load %arg9[%c0_64, %c256] : memref<16x512xbf16, #tpu.memory_space<vmem>>, vector<16x128xbf16>
    tpu.vector_store %arg9[%c0_64, %c256], %58 {strides = array<i32>} : memref<16x512xbf16, #tpu.memory_space<vmem>>, vector<16x128xbf16>,
    %c0_65 = arith.constant 0 : index
    %c3_66 = arith.constant 3 : index
    %c0_67 = arith.constant 0 : index
    %c0_68 = arith.constant 0 : index
    %60 = vector.load %arg1[%c0_65, %c3_66, %c0_67, %c0_68] : memref<4x4x16x128xbf16, #tpu.memory_space<vmem>>, vector<1x1x16x128xbf16>
    %61 = vector.shape_cast %60 : vector<1x1x16x128xbf16> to vector<16x128xbf16>
    %c1_69 = arith.constant 1 : index
    %c3_70 = arith.constant 3 : index
    %c0_71 = arith.constant 0 : index
    %c0_72 = arith.constant 0 : index
    %62 = vector.load %arg1[%c1_69, %c3_70, %c0_71, %c0_72] : memref<4x4x16x128xbf16, #tpu.memory_space<vmem>>, vector<1x1x16x128xbf16>
    %63 = vector.shape_cast %62 : vector<1x1x16x128xbf16> to vector<16x128xbf16>
    %64 = arith.addf %61, %63 : vector<16x128xbf16>
    %c2_73 = arith.constant 2 : index
    %c3_74 = arith.constant 3 : index
    %c0_75 = arith.constant 0 : index
    %c0_76 = arith.constant 0 : index
    %65 = vector.load %arg1[%c2_73, %c3_74, %c0_75, %c0_76] : memref<4x4x16x128xbf16, #tpu.memory_space<vmem>>, vector<1x1x16x128xbf16>
    %66 = vector.shape_cast %65 : vector<1x1x16x128xbf16> to vector<16x128xbf16>
    %67 = arith.addf %64, %66 : vector<16x128xbf16>
    %c3_77 = arith.constant 3 : index
    %c3_78 = arith.constant 3 : index
    %c0_79 = arith.constant 0 : index
    %c0_80 = arith.constant 0 : index
    %68 = vector.load %arg1[%c3_77, %c3_78, %c0_79, %c0_80] : memref<4x4x16x128xbf16, #tpu.memory_space<vmem>>, vector<1x1x16x128xbf16>
    %69 = vector.shape_cast %68 : vector<1x1x16x128xbf16> to vector<16x128xbf16>
    %70 = arith.addf %67, %69 : vector<16x128xbf16>
    %c0_81 = arith.constant 0 : index
    %c0_82 = arith.constant 0 : index
    %71 = vector.load %arg2[%c0_81, %c0_82] : memref<128x128xbf16, #tpu.memory_space<vmem>>, vector<128x128xbf16>
    %cst_83 = arith.constant dense<0.000000e+00> : vector<16x128xf32>
    %72 = tpu.matmul %70, %71, %cst_83 {dimension_numbers = #tpu.dot_dimension_numbers<[1], [0], [0], [1], [0, 0, 1, 1], [], []>} : vector<16x128xbf16>, vector<128x128xbf16>, vector<16x128xf32> -> vector<16x128xf32>
    %c0_84 = arith.constant 0 : index
    %c0_85 = arith.constant 0 : index
    %73 = vector.load %arg3[%c0_84, %c0_85] : memref<1x128xf32, #tpu.memory_space<vmem>>, vector<1x128xf32>
    %74 = vector.broadcast %73 : vector<1x128xf32> to vector<16x128xf32>
    %75 = arith.addf %72, %74 : vector<16x128xf32>
    %cst_86 = arith.constant 0.000000e+00 : f32
    %76 = vector.broadcast %cst_86 : f32 to vector<16x128xf32>
    %77 = arith.maximumf %75, %76 : vector<16x128xf32>
    %78 = arith.truncf %77 : vector<16x128xf32> to vector<16x128xbf16>
    %c0_87 = arith.constant 0 : index
    %c384 = arith.constant 384 : index
    %79 = vector.load %arg9[%c0_87, %c384] : memref<16x512xbf16, #tpu.memory_space<vmem>>, vector<16x128xbf16>
    tpu.vector_store %arg9[%c0_87, %c384], %78 {strides = array<i32>} : memref<16x512xbf16, #tpu.memory_space<vmem>>, vector<16x128xbf16>,
    %c0_88 = arith.constant 0 : index
    %c0_89 = arith.constant 0 : index
    %80 = vector.load %arg9[%c0_88, %c0_89] : memref<16x512xbf16, #tpu.memory_space<vmem>>, vector<16x512xbf16>
    %c0_90 = arith.constant 0 : index
    %c0_91 = arith.constant 0 : index
    %81 = vector.load %arg4[%c0_90, %c0_91] : memref<512x256xbf16, #tpu.memory_space<vmem>>, vector<512x256xbf16>
    %cst_92 = arith.constant dense<0.000000e+00> : vector<16x256xf32>
    %82 = tpu.matmul %80, %81, %cst_92 {dimension_numbers = #tpu.dot_dimension_numbers<[1], [0], [0], [1], [0, 0, 1, 1], [], []>} : vector<16x512xbf16>, vector<512x256xbf16>, vector<16x256xf32> -> vector<16x256xf32>
    %c0_93 = arith.constant 0 : index
    %c0_94 = arith.constant 0 : index
    %83 = vector.load %arg5[%c0_93, %c0_94] : memref<1x256xf32, #tpu.memory_space<vmem>>, vector<1x256xf32>
    %84 = vector.broadcast %83 : vector<1x256xf32> to vector<16x256xf32>
    %85 = arith.addf %82, %84 : vector<16x256xf32>
    %cst_95 = arith.constant 0.000000e+00 : f32
    %86 = vector.broadcast %cst_95 : f32 to vector<16x256xf32>
    %87 = arith.maximumf %85, %86 : vector<16x256xf32>
    %88 = arith.truncf %87 : vector<16x256xf32> to vector<16x256xbf16>
    %c0_96 = arith.constant 0 : index
    %c0_97 = arith.constant 0 : index
    %89 = vector.load %arg6[%c0_96, %c0_97] : memref<256x128xbf16, #tpu.memory_space<vmem>>, vector<256x128xbf16>
    %cst_98 = arith.constant dense<0.000000e+00> : vector<16x128xf32>
    %90 = tpu.matmul %88, %89, %cst_98 {dimension_numbers = #tpu.dot_dimension_numbers<[1], [0], [0], [1], [0, 0, 1, 1], [], []>} : vector<16x256xbf16>, vector<256x128xbf16>, vector<16x128xf32> -> vector<16x128xf32>
    %c0_99 = arith.constant 0 : index
    %c0_100 = arith.constant 0 : index
    %91 = vector.load %arg7[%c0_99, %c0_100] : memref<1x128xf32, #tpu.memory_space<vmem>>, vector<1x128xf32>
    %92 = vector.broadcast %91 : vector<1x128xf32> to vector<16x128xf32>
    %93 = arith.addf %90, %92 : vector<16x128xf32>
    %c0_101 = arith.constant 0 : index
    %c0_102 = arith.constant 0 : index
    %94 = vector.load %arg8[%c0_101, %c0_102] : memref<16x128xf32, #tpu.memory_space<vmem>>, vector<16x128xf32>
    tpu.vector_store %arg8[%c0_101, %c0_102], %93 {strides = array<i32>} : memref<16x128xf32, #tpu.memory_space<vmem>>, vector<16x128xf32>,
    return
  }
  func.func @transform_0(%arg0: i32) -> (i32, i32, i32, i32) {
    %c0_i32 = arith.constant 0 : i32
    %c0_i32_0 = arith.constant 0 : i32
    %c0_i32_1 = arith.constant 0 : i32
    %c0_i32_2 = arith.constant 0 : i32
    return %c0_i32, %c0_i32_0, %arg0, %c0_i32_1 : i32, i32, i32, i32
  }
  func.func @transform_1(%arg0: i32) -> (i32, i32) {
    %c0_i32 = arith.constant 0 : i32
    %c0_i32_0 = arith.constant 0 : i32
    %c0_i32_1 = arith.constant 0 : i32
    return %c0_i32, %c0_i32_0 : i32, i32
  }
  func.func @transform_2(%arg0: i32) -> (i32, i32) {
    %c0_i32 = arith.constant 0 : i32
    %c0_i32_0 = arith.constant 0 : i32
    %c0_i32_1 = arith.constant 0 : i32
    return %c0_i32, %c0_i32_0 : i32, i32
  }
  func.func @transform_3(%arg0: i32) -> (i32, i32) {
    %c0_i32 = arith.constant 0 : i32
    %c0_i32_0 = arith.constant 0 : i32
    %c0_i32_1 = arith.constant 0 : i32
    return %c0_i32, %c0_i32_0 : i32, i32
  }
  func.func @transform_4(%arg0: i32) -> (i32, i32) {
    %c0_i32 = arith.constant 0 : i32
    %c0_i32_0 = arith.constant 0 : i32
    %c0_i32_1 = arith.constant 0 : i32
    return %c0_i32, %c0_i32_0 : i32, i32
  }
  func.func @transform_5(%arg0: i32) -> (i32, i32) {
    %c0_i32 = arith.constant 0 : i32
    %c0_i32_0 = arith.constant 0 : i32
    %c0_i32_1 = arith.constant 0 : i32
    return %c0_i32, %c0_i32_0 : i32, i32
  }
  func.func @transform_6(%arg0: i32) -> (i32, i32) {
    %c0_i32 = arith.constant 0 : i32
    %c0_i32_0 = arith.constant 0 : i32
    %c0_i32_1 = arith.constant 0 : i32
    return %c0_i32, %c0_i32_0 : i32, i32
  }
  func.func @transform_7(%arg0: i32) -> (i32, i32) {
    %c0_i32 = arith.constant 0 : i32
    %c0_i32_0 = arith.constant 0 : i32
    return %arg0, %c0_i32 : i32, i32
  }
}

</mosaic_0001>

<llo_original>
// kernel: tpu_custom_call.1
$region0: #{tpu_custom_call.1}
  #allocation0 [shape = 'u32[]', space=smem, size = 0x4, offset = 0x4, fixed_abs, tag = 'smem constant byte address 0x4 - core index']
  #allocation1 [shape = 'u32[72,128]{1,0:T(1,128)}', space=vmem, size = 0x9000, scoped, tag = 'internal scratch']
  #allocation2 [shape = 'bf16[16,512]{1,0:T(8,128)(2,1)}', space=vmem, size = 0x4000, scoped, tag = 'scratch operand']
  %s0 = inlined_call_operand.hbm [shape: bf16[4,4,16,128], index: 0, kind: input, shape index: {}]
  %s1 = inlined_call_operand.hbm [shape: bf16[128,128], index: 1, kind: input, shape index: {}]
  %s2 = inlined_call_operand.vmem [shape: f32[1,128], index: 2, kind: input, shape index: {}]
  %s3 = inlined_call_operand.hbm [shape: bf16[512,256], index: 3, kind: input, shape index: {}]
  %s4 = inlined_call_operand.vmem [shape: f32[1,256], index: 4, kind: input, shape index: {}]
  %s5 = inlined_call_operand.hbm [shape: bf16[256,128], index: 5, kind: input, shape index: {}]
  %s6 = inlined_call_operand.vmem [shape: f32[1,128], index: 6, kind: input, shape index: {}]
  %s7 = inlined_call_operand.hbm [shape: f32[16,128], index: 7, kind: output, shape index: {}]
  %s8 = sld [smem:[#allocation0]]
  $region54: #{tpu_custom_call.1} parent=0
    _
  %s10 = ssub.s32 1, %s8
  %s11 = scalar_select 0, %s10, %s8
  $region1: #{tpu_custom_call.1} parent=0
    #allocation3 [shape = 'u8[65536]{0}', space=vmem, size = 0x10000, scoped, tag = 'input window, operand 0, single buffered']
    #allocation4 [shape = 's32[1]{0}', space=sflag, size = 0x4, scoped, tag = 'scoped memory for tpu_custom_call.1']
    #allocation5 [shape = 's32[1]{0}', space=sflag, size = 0x4, scoped, tag = 'scoped memory for tpu_custom_call.1']
    #allocation6 [shape = 'u8[32768]{0}', space=vmem, size = 0x8000, scoped, tag = 'input window, operand 1, single buffered']
    #allocation7 [shape = 's32[1]{0}', space=sflag, size = 0x4, scoped, tag = 'scoped memory for tpu_custom_call.1']
    #allocation8 [shape = 'u8[262144]{0}', space=vmem, size = 0x40000, scoped, tag = 'input window, operand 3, single buffered']
    #allocation9 [shape = 'u8[65536]{0}', space=vmem, size = 0x10000, scoped, tag = 'input window, operand 5, single buffered']
    #allocation10 [shape = 's32[1]{0}', space=sflag, size = 0x4, scoped, tag = 'scoped memory for tpu_custom_call.1']
    #allocation11 [shape = 'u8[8192]{0}', space=vmem, size = 0x2000, scoped, tag = 'output window, operand 0, single buffered']
    %12 = vsyncpa [#allocation4], 0
    %13 = vsyncpa [#allocation7], 0
    %14 = vsyncpa [#allocation10], 0
    %15 = vsyncpa [#allocation5], 0
    // Predicated region
    $region2: #{tpu_custom_call.1} parent=1 // pred_check
      _
    $region3: #{tpu_custom_call.1} parent=1 // pred_check_branch
      %17 = sbr.rel (0) target = $region5
    $region4: #{tpu_custom_call.1} parent=1 // pred_region
      %19 = vsyncadd [#allocation4], 0
      %s20 = sshll.u32 %s0, 4
      %s21 = int_to_ptr.hbm [resolvable:$true] %s20
      %s22 = sshll.u32 [#allocation3], 4
      %s23 = int_to_ptr.vmem [resolvable:$true] %s22
      %28 = dma.hbm_to_vmem [thread:$0]  %s21, 2048, %s23, [#allocation4], 64, 64, 4
    $region5: #{tpu_custom_call.1} parent=1 // pred_fallthru
      _
    // Predicated region
    $region6: #{tpu_custom_call.1} parent=1 // pred_check
      _
    $region7: #{tpu_custom_call.1} parent=1 // pred_check_branch
      %30 = sbr.rel (0) target = $region9
    $region8: #{tpu_custom_call.1} parent=1 // pred_region
      %32 = vsyncadd [#allocation7], 0
      %s33 = sshll.u32 %s1, 4
      %s34 = int_to_ptr.hbm [resolvable:$true] %s33
      %s35 = sshll.u32 [#allocation6], 4
      %s36 = int_to_ptr.vmem [resolvable:$true] %s35
      %41 = dma.hbm_to_vmem [thread:$0]  %s34, 1024, %s36, [#allocation7], 64, 64, 4
    $region9: #{tpu_custom_call.1} parent=1 // pred_fallthru
      _
    // Predicated region
    $region10: #{tpu_custom_call.1} parent=1 // pred_check
      _
    $region11: #{tpu_custom_call.1} parent=1 // pred_check_branch
      %43 = sbr.rel (0) target = $region13
    $region12: #{tpu_custom_call.1} parent=1 // pred_region
      _
    $region13: #{tpu_custom_call.1} parent=1 // pred_fallthru
      _
    // Predicated region
    $region14: #{tpu_custom_call.1} parent=1 // pred_check
      _
    $region15: #{tpu_custom_call.1} parent=1 // pred_check_branch
      %45 = sbr.rel (0) target = $region17
    $region16: #{tpu_custom_call.1} parent=1 // pred_region
      %47 = vsyncadd [#allocation7], 0
      %s48 = sshll.u32 %s3, 4
      %s49 = int_to_ptr.hbm [resolvable:$true] %s48
      %s50 = sshll.u32 [#allocation8], 4
      %s51 = int_to_ptr.vmem [resolvable:$true] %s50
      %56 = dma.hbm_to_vmem [thread:$0]  %s49, 8192, %s51, [#allocation7], 128, 128, 8
    $region17: #{tpu_custom_call.1} parent=1 // pred_fallthru
      _
    // Predicated region
    $region18: #{tpu_custom_call.1} parent=1 // pred_check
      _
    $region19: #{tpu_custom_call.1} parent=1 // pred_check_branch
      %58 = sbr.rel (0) target = $region21
    $region20: #{tpu_custom_call.1} parent=1 // pred_region
      _
    $region21: #{tpu_custom_call.1} parent=1 // pred_fallthru
      _
    // Predicated region
    $region22: #{tpu_custom_call.1} parent=1 // pred_check
      _
    $region23: #{tpu_custom_call.1} parent=1 // pred_check_branch
      %60 = sbr.rel (0) target = $region25
    $region24: #{tpu_custom_call.1} parent=1 // pred_region
      %62 = vsyncadd [#allocation10], 0
      %s63 = sshll.u32 %s5, 4
      %s64 = int_to_ptr.hbm [resolvable:$true] %s63
      %s65 = sshll.u32 [#allocation9], 4
      %s66 = int_to_ptr.vmem [resolvable:$true] %s65
      %71 = dma.hbm_to_vmem [thread:$0]  %s64, 2048, %s66, [#allocation10], 64, 64, 4
    $region25: #{tpu_custom_call.1} parent=1 // pred_fallthru
      _
    // Predicated region
    $region26: #{tpu_custom_call.1} parent=1 // pred_check
      _
    $region27: #{tpu_custom_call.1} parent=1 // pred_check_branch
      %73 = sbr.rel (0) target = $region29
    $region28: #{tpu_custom_call.1} parent=1 // pred_region
      _
    $region29: #{tpu_custom_call.1} parent=1 // pred_fallthru
      _
    // Predicated region
    $region30: #{tpu_custom_call.1} parent=1 // pred_check
      _
    $region31: #{tpu_custom_call.1} parent=1 // pred_check_branch
      %75 = sbr.rel (0) target = $region33
    $region32: #{tpu_custom_call.1} parent=1 // pred_region
      %77 = dma.done [#allocation4], 2048
    $region33: #{tpu_custom_call.1} parent=1 // pred_fallthru
      _
    // Predicated region
    $region34: #{tpu_custom_call.1} parent=1 // pred_check
      _
    $region35: #{tpu_custom_call.1} parent=1 // pred_check_branch
      %79 = sbr.rel (0) target = $region37
    $region36: #{tpu_custom_call.1} parent=1 // pred_region
      %81 = dma.done [#allocation7], 1024
    $region37: #{tpu_custom_call.1} parent=1 // pred_fallthru
      _
    // Predicated region
    $region38: #{tpu_custom_call.1} parent=1 // pred_check
      _
    $region39: #{tpu_custom_call.1} parent=1 // pred_check_branch
      %83 = sbr.rel (0) target = $region41
    $region40: #{tpu_custom_call.1} parent=1 // pred_region
      %85 = dma.done [#allocation7], 8192
    $region41: #{tpu_custom_call.1} parent=1 // pred_fallthru
      _
    // Predicated region
    $region42: #{tpu_custom_call.1} parent=1 // pred_check
      _
    $region43: #{tpu_custom_call.1} parent=1 // pred_check_branch
      %87 = sbr.rel (0) target = $region45
    $region44: #{tpu_custom_call.1} parent=1 // pred_region
      %89 = dma.done [#allocation10], 2048
    $region45: #{tpu_custom_call.1} parent=1 // pred_fallthru
      _
    %v90 = vld [vmem:[#allocation3] sm:$0xf]
    %v91 = vld [vmem:[#allocation3 + $0x4] sm:$0xf]
    %s92 = scalar_lea.vmem [#allocation3], 32
    %v93 = vld [vmem:[%s92] sm:$0xf]
    %v94 = vld [vmem:[%s92 + $0x4] sm:$0xf]
    %v95 = vunpack.c.l.bf16 %v90
    %v96 = vunpack.c.l.bf16 %v91
    %v97 = vunpack.c.l.bf16 %v93
    %v98 = vunpack.c.l.bf16 %v94
    %v99 = vadd.f32 %v95, %v97
    %v100 = vadd.f32 %v96, %v98
    %v101 = vpack.c.bf16 %v99, %v99
    %v102 = vpack.c.bf16 %v100, %v100
    %s103 = scalar_lea.vmem [#allocation3], 64
    %v104 = vld [vmem:[%s103] sm:$0xf]
    %v105 = vld [vmem:[%s103 + $0x4] sm:$0xf]
    %v106 = vunpack.c.l.bf16 %v101
    %v107 = vunpack.c.l.bf16 %v102
    %v108 = vunpack.c.l.bf16 %v104
    %v109 = vunpack.c.l.bf16 %v105
    %v110 = vadd.f32 %v106, %v108
    %v111 = vadd.f32 %v107, %v109
    %v112 = vpack.c.bf16 %v110, %v110
    %v113 = vpack.c.bf16 %v111, %v111
    %s114 = scalar_lea.vmem [#allocation3], 96
    %v115 = vld [vmem:[%s114] sm:$0xf]
    %v116 = vld [vmem:[%s114 + $0x4] sm:$0xf]
    %v117 = vunpack.c.l.bf16 %v112
    %v118 = vunpack.c.l.bf16 %v113
    %v119 = vunpack.c.l.bf16 %v115
    %v120 = vunpack.c.l.bf16 %v116
    %v121 = vadd.f32 %v117, %v119
    %v122 = vadd.f32 %v118, %v120
    %v123 = vpack.c.bf16 %v122, %v121
    %v124 = vld [vmem:[#allocation6] sm:$0xf]
    %v125 = vld [vmem:[#allocation6 + $0x4] sm:$0xf]
    %v126 = vld [vmem:[#allocation6 + $0x8] sm:$0xf]
    %v127 = vld [vmem:[#allocation6 + $0xc] sm:$0xf]
    %v128 = vld [vmem:[#allocation6 + $0x10] sm:$0xf]
    %v129 = vld [vmem:[#allocation6 + $0x14] sm:$0xf]
    %v130 = vld [vmem:[#allocation6 + $0x18] sm:$0xf]
    %v131 = vld [vmem:[#allocation6 + $0x1c] sm:$0xf]
    %v132 = vld [vmem:[#allocation6 + $0x20] sm:$0xf]
    %v133 = vld [vmem:[#allocation6 + $0x24] sm:$0xf]
    %v134 = vld [vmem:[#allocation6 + $0x28] sm:$0xf]
    %v135 = vld [vmem:[#allocation6 + $0x2c] sm:$0xf]
    %v136 = vld [vmem:[#allocation6 + $0x30] sm:$0xf]
    %v137 = vld [vmem:[#allocation6 + $0x34] sm:$0xf]
    %v138 = vld [vmem:[#allocation6 + $0x38] sm:$0xf]
    %v139 = vld [vmem:[#allocation6 + $0x3c] sm:$0xf]
    %v140 = vld [vmem:[%s2] sm:$0x1]
    %v142 = vperm.slane %v140, 0
    %v160 = vunpack.c.l.b16 %v124
    %v161 = vunpack.c.l.b16 %v125
    %v162 = vunpack.c.l.b16 %v126
    %v163 = vunpack.c.l.b16 %v127
    %v164 = vunpack.c.l.b16 %v128
    %v165 = vunpack.c.l.b16 %v129
    %v166 = vunpack.c.l.b16 %v130
    %v167 = vunpack.c.l.b16 %v131
    %v168 = vunpack.c.l.b16 %v132
    %v169 = vunpack.c.l.b16 %v133
    %v170 = vunpack.c.l.b16 %v134
    %v171 = vunpack.c.l.b16 %v135
    %v172 = vunpack.c.l.b16 %v136
    %v173 = vunpack.c.l.b16 %v137
    %v174 = vunpack.c.l.b16 %v138
    %v175 = vunpack.c.l.b16 %v139
    %v176 = vpack.c.b16 %v161, %v160
    %v177 = vpack.c.b16 %v163, %v162
    %v178 = vpack.c.b16 %v165, %v164
    %v179 = vpack.c.b16 %v167, %v166
    %v180 = vpack.c.b16 %v169, %v168
    %v181 = vpack.c.b16 %v171, %v170
    %v182 = vpack.c.b16 %v173, %v172
    %v183 = vpack.c.b16 %v175, %v174
    %192 = vmatpush.bf16.msra.mxu0 %v183
    %193 = vmatpush.bf16.msra.mxu0 %v182
    %194 = vmatpush.bf16.msra.mxu0 %v181
    %195 = vmatpush.bf16.msra.mxu0 %v180
    %196 = vmatpush.bf16.msra.mxu0 %v179
    %197 = vmatpush.bf16.msra.mxu0 %v178
    %198 = vmatpush.bf16.msra.mxu0 %v177
    %199 = vmatpush.bf16.msra.mxu0 %v176
    %200 = vmatmul.bf16.gmra.mxu0 %v123
    %v201 = vpop.f32.mrf.mxu0
    %v202 = vadd.f32 %v142, %v201
    %v203 = vpop.f32.mrf.mxu0
    %v204 = vadd.f32 %v142, %v203
    %205 = vdwg.mxu0
    %v206 = vmax.f32 %v202, 0.0
    %v207 = vmax.f32 %v204, 0.0
    %v208 = vpack.c.bf16 %v206, %v206
    %v209 = vpack.c.bf16 %v207, %v207
    %210 = vst [vmem:[#allocation2] sm:$0xf] %v208
    %211 = vst [vmem:[#allocation2 + $0x10] sm:$0xf] %v209
    %s212 = scalar_lea.vmem [#allocation3], 8
    %v213 = vld [vmem:[%s212] sm:$0xf]
    %v214 = vld [vmem:[%s212 + $0x4] sm:$0xf]
    %s215 = scalar_lea.vmem [#allocation3], 40
    %v216 = vld [vmem:[%s215] sm:$0xf]
    %v217 = vld [vmem:[%s215 + $0x4] sm:$0xf]
    %v218 = vunpack.c.l.bf16 %v213
    %v219 = vunpack.c.l.bf16 %v214
    %v220 = vunpack.c.l.bf16 %v216
    %v221 = vunpack.c.l.bf16 %v217
    %v222 = vadd.f32 %v218, %v220
    %v223 = vadd.f32 %v219, %v221
    %v224 = vpack.c.bf16 %v222, %v222
    %v225 = vpack.c.bf16 %v223, %v223
    %s226 = scalar_lea.vmem [#allocation3], 72
    %v227 = vld [vmem:[%s226] sm:$0xf]
    %v228 = vld [vmem:[%s226 + $0x4] sm:$0xf]
    %v229 = vunpack.c.l.bf16 %v224
    %v230 = vunpack.c.l.bf16 %v225
    %v231 = vunpack.c.l.bf16 %v227
    %v232 = vunpack.c.l.bf16 %v228
    %v233 = vadd.f32 %v229, %v231
    %v234 = vadd.f32 %v230, %v232
    %v235 = vpack.c.bf16 %v233, %v233
    %v236 = vpack.c.bf16 %v234, %v234
    %s237 = scalar_lea.vmem [#allocation3], 104
    %v238 = vld [vmem:[%s237] sm:$0xf]
    %v239 = vld [vmem:[%s237 + $0x4] sm:$0xf]
    %v240 = vunpack.c.l.bf16 %v235
    %v241 = vunpack.c.l.bf16 %v236
    %v242 = vunpack.c.l.bf16 %v238
    %v243 = vunpack.c.l.bf16 %v239
    %v244 = vadd.f32 %v240, %v242
    %v245 = vadd.f32 %v241, %v243
    %v246 = vpack.c.bf16 %v245, %v244
    %v247 = vld [vmem:[#allocation6] sm:$0xf]
    %v248 = vld [vmem:[#allocation6 + $0x4] sm:$0xf]
    %v249 = vld [vmem:[#allocation6 + $0x8] sm:$0xf]
    %v250 = vld [vmem:[#allocation6 + $0xc] sm:$0xf]
    %v251 = vld [vmem:[#allocation6 + $0x10] sm:$0xf]
    %v252 = vld [vmem:[#allocation6 + $0x14] sm:$0xf]
    %v253 = vld [vmem:[#allocation6 + $0x18] sm:$0xf]
    %v254 = vld [vmem:[#allocation6 + $0x1c] sm:$0xf]
    %v255 = vld [vmem:[#allocation6 + $0x20] sm:$0xf]
    %v256 = vld [vmem:[#allocation6 + $0x24] sm:$0xf]
    %v257 = vld [vmem:[#allocation6 + $0x28] sm:$0xf]
    %v258 = vld [vmem:[#allocation6 + $0x2c] sm:$0xf]
    %v259 = vld [vmem:[#allocation6 + $0x30] sm:$0xf]
    %v260 = vld [vmem:[#allocation6 + $0x34] sm:$0xf]
    %v261 = vld [vmem:[#allocation6 + $0x38] sm:$0xf]
    %v262 = vld [vmem:[#allocation6 + $0x3c] sm:$0xf]
    %v263 = vld [vmem:[%s2] sm:$0x1]
    %v265 = vperm.slane %v263, 0
    %v283 = vunpack.c.l.b16 %v247
    %v284 = vunpack.c.l.b16 %v248
    %v285 = vunpack.c.l.b16 %v249
    %v286 = vunpack.c.l.b16 %v250
    %v287 = vunpack.c.l.b16 %v251
    %v288 = vunpack.c.l.b16 %v252
    %v289 = vunpack.c.l.b16 %v253
    %v290 = vunpack.c.l.b16 %v254
    %v291 = vunpack.c.l.b16 %v255
    %v292 = vunpack.c.l.b16 %v256
    %v293 = vunpack.c.l.b16 %v257
    %v294 = vunpack.c.l.b16 %v258
    %v295 = vunpack.c.l.b16 %v259
    %v296 = vunpack.c.l.b16 %v260
    %v297 = vunpack.c.l.b16 %v261
    %v298 = vunpack.c.l.b16 %v262
    %v299 = vpack.c.b16 %v284, %v283
    %v300 = vpack.c.b16 %v286, %v285
    %v301 = vpack.c.b16 %v288, %v287
    %v302 = vpack.c.b16 %v290, %v289
    %v303 = vpack.c.b16 %v292, %v291
    %v304 = vpack.c.b16 %v294, %v293
    %v305 = vpack.c.b16 %v296, %v295
    %v306 = vpack.c.b16 %v298, %v297
    %315 = vmatpush.bf16.msra.mxu0 %v306
    %316 = vmatpush.bf16.msra.mxu0 %v305
    %317 = vmatpush.bf16.msra.mxu0 %v304
    %318 = vmatpush.bf16.msra.mxu0 %v303
    %319 = vmatpush.bf16.msra.mxu0 %v302
    %320 = vmatpush.bf16.msra.mxu0 %v301
    %321 = vmatpush.bf16.msra.mxu0 %v300
    %322 = vmatpush.bf16.msra.mxu0 %v299
    %323 = vmatmul.bf16.gmra.mxu0 %v246
    %v324 = vpop.f32.mrf.mxu0
    %v325 = vadd.f32 %v265, %v324
    %v326 = vpop.f32.mrf.mxu0
    %v327 = vadd.f32 %v265, %v326
    %328 = vdwg.mxu0
    %v329 = vmax.f32 %v325, 0.0
    %v330 = vmax.f32 %v327, 0.0
    %v331 = vpack.c.bf16 %v329, %v329
    %v332 = vpack.c.bf16 %v330, %v330
    %333 = vst [vmem:[#allocation2 + $0x4] sm:$0xf] %v331
    %334 = vst [vmem:[#allocation2 + $0x14] sm:$0xf] %v332
    %s335 = scalar_lea.vmem [#allocation3], 16
    %v336 = vld [vmem:[%s335] sm:$0xf]
    %v337 = vld [vmem:[%s335 + $0x4] sm:$0xf]
    %s338 = scalar_lea.vmem [#allocation3], 48
    %v339 = vld [vmem:[%s338] sm:$0xf]
    %v340 = vld [vmem:[%s338 + $0x4] sm:$0xf]
    %v341 = vunpack.c.l.bf16 %v336
    %v342 = vunpack.c.l.bf16 %v337
    %v343 = vunpack.c.l.bf16 %v339
    %v344 = vunpack.c.l.bf16 %v340
    %v345 = vadd.f32 %v341, %v343
    %v346 = vadd.f32 %v342, %v344
    %v347 = vpack.c.bf16 %v345, %v345
    %v348 = vpack.c.bf16 %v346, %v346
    %s349 = scalar_lea.vmem [#allocation3], 80
    %v350 = vld [vmem:[%s349] sm:$0xf]
    %v351 = vld [vmem:[%s349 + $0x4] sm:$0xf]
    %v352 = vunpack.c.l.bf16 %v347
    %v353 = vunpack.c.l.bf16 %v348
    %v354 = vunpack.c.l.bf16 %v350
    %v355 = vunpack.c.l.bf16 %v351
    %v356 = vadd.f32 %v352, %v354
    %v357 = vadd.f32 %v353, %v355
    %v358 = vpack.c.bf16 %v356, %v356
    %v359 = vpack.c.bf16 %v357, %v357
    %s360 = scalar_lea.vmem [#allocation3], 112
    %v361 = vld [vmem:[%s360] sm:$0xf]
    %v362 = vld [vmem:[%s360 + $0x4] sm:$0xf]
    %v363 = vunpack.c.l.bf16 %v358
    %v364 = vunpack.c.l.bf16 %v359
    %v365 = vunpack.c.l.bf16 %v361
    %v366 = vunpack.c.l.bf16 %v362
    %v367 = vadd.f32 %v363, %v365
    %v368 = vadd.f32 %v364, %v366
    %v369 = vpack.c.bf16 %v368, %v367
    %v370 = vld [vmem:[#allocation6] sm:$0xf]
    %v371 = vld [vmem:[#allocation6 + $0x4] sm:$0xf]
    %v372 = vld [vmem:[#allocation6 + $0x8] sm:$0xf]
    %v373 = vld [vmem:[#allocation6 + $0xc] sm:$0xf]
    %v374 = vld [vmem:[#allocation6 + $0x10] sm:$0xf]
    %v375 = vld [vmem:[#allocation6 + $0x14] sm:$0xf]
    %v376 = vld [vmem:[#allocation6 + $0x18] sm:$0xf]
    %v377 = vld [vmem:[#allocation6 + $0x1c] sm:$0xf]
    %v378 = vld [vmem:[#allocation6 + $0x20] sm:$0xf]
    %v379 = vld [vmem:[#allocation6 + $0x24] sm:$0xf]
    %v380 = vld [vmem:[#allocation6 + $0x28] sm:$0xf]
    %v381 = vld [vmem:[#allocation6 + $0x2c] sm:$0xf]
    %v382 = vld [vmem:[#allocation6 + $0x30] sm:$0xf]
    %v383 = vld [vmem:[#allocation6 + $0x34] sm:$0xf]
    %v384 = vld [vmem:[#allocation6 + $0x38] sm:$0xf]
    %v385 = vld [vmem:[#allocation6 + $0x3c] sm:$0xf]
    %v386 = vld [vmem:[%s2] sm:$0x1]
    %v388 = vperm.slane %v386, 0
    %v406 = vunpack.c.l.b16 %v370
    %v407 = vunpack.c.l.b16 %v371
    %v408 = vunpack.c.l.b16 %v372
    %v409 = vunpack.c.l.b16 %v373
    %v410 = vunpack.c.l.b16 %v374
    %v411 = vunpack.c.l.b16 %v375
    %v412 = vunpack.c.l.b16 %v376
    %v413 = vunpack.c.l.b16 %v377
    %v414 = vunpack.c.l.b16 %v378
    %v415 = vunpack.c.l.b16 %v379
    %v416 = vunpack.c.l.b16 %v380
    %v417 = vunpack.c.l.b16 %v381
    %v418 = vunpack.c.l.b16 %v382
    %v419 = vunpack.c.l.b16 %v383
    %v420 = vunpack.c.l.b16 %v384
    %v421 = vunpack.c.l.b16 %v385
    %v422 = vpack.c.b16 %v407, %v406
    %v423 = vpack.c.b16 %v409, %v408
    %v424 = vpack.c.b16 %v411, %v410
    %v425 = vpack.c.b16 %v413, %v412
    %v426 = vpack.c.b16 %v415, %v414
    %v427 = vpack.c.b16 %v417, %v416
    %v428 = vpack.c.b16 %v419, %v418
    %v429 = vpack.c.b16 %v421, %v420
    %438 = vmatpush.bf16.msra.mxu0 %v429
    %439 = vmatpush.bf16.msra.mxu0 %v428
    %440 = vmatpush.bf16.msra.mxu0 %v427
    %441 = vmatpush.bf16.msra.mxu0 %v426
    %442 = vmatpush.bf16.msra.mxu0 %v425
    %443 = vmatpush.bf16.msra.mxu0 %v424
    %444 = vmatpush.bf16.msra.mxu0 %v423
    %445 = vmatpush.bf16.msra.mxu0 %v422
    %446 = vmatmul.bf16.gmra.mxu0 %v369
    %v447 = vpop.f32.mrf.mxu0
    %v448 = vadd.f32 %v388, %v447
    %v449 = vpop.f32.mrf.mxu0
    %v450 = vadd.f32 %v388, %v449
    %451 = vdwg.mxu0
    %v452 = vmax.f32 %v448, 0.0
    %v453 = vmax.f32 %v450, 0.0
    %v454 = vpack.c.bf16 %v452, %v452
    %v455 = vpack.c.bf16 %v453, %v453
    %456 = vst [vmem:[#allocation2 + $0x8] sm:$0xf] %v454
    %457 = vst [vmem:[#allocation2 + $0x18] sm:$0xf] %v455
    %s458 = scalar_lea.vmem [#allocation3], 24
    %v459 = vld [vmem:[%s458] sm:$0xf]
    %v460 = vld [vmem:[%s458 + $0x4] sm:$0xf]
    %s461 = scalar_lea.vmem [#allocation3], 56
    %v462 = vld [vmem:[%s461] sm:$0xf]
    %v463 = vld [vmem:[%s461 + $0x4] sm:$0xf]
    %v464 = vunpack.c.l.bf16 %v459
    %v465 = vunpack.c.l.bf16 %v460
    %v466 = vunpack.c.l.bf16 %v462
    %v467 = vunpack.c.l.bf16 %v463
    %v468 = vadd.f32 %v464, %v466
    %v469 = vadd.f32 %v465, %v467
    %v470 = vpack.c.bf16 %v468, %v468
    %v471 = vpack.c.bf16 %v469, %v469
    %s472 = scalar_lea.vmem [#allocation3], 88
    %v473 = vld [vmem:[%s472] sm:$0xf]
    %v474 = vld [vmem:[%s472 + $0x4] sm:$0xf]
    %v475 = vunpack.c.l.bf16 %v470
    %v476 = vunpack.c.l.bf16 %v471
    %v477 = vunpack.c.l.bf16 %v473
    %v478 = vunpack.c.l.bf16 %v474
    %v479 = vadd.f32 %v475, %v477
    %v480 = vadd.f32 %v476, %v478
    %v481 = vpack.c.bf16 %v479, %v479
    %v482 = vpack.c.bf16 %v480, %v480
    %s483 = scalar_lea.vmem [#allocation3], 120
    %v484 = vld [vmem:[%s483] sm:$0xf]
    %v485 = vld [vmem:[%s483 + $0x4] sm:$0xf]
    %v486 = vunpack.c.l.bf16 %v481
    %v487 = vunpack.c.l.bf16 %v482
    %v488 = vunpack.c.l.bf16 %v484
    %v489 = vunpack.c.l.bf16 %v485
    %v490 = vadd.f32 %v486, %v488
    %v491 = vadd.f32 %v487, %v489
    %v492 = vpack.c.bf16 %v491, %v490
    %v493 = vld [vmem:[#allocation6] sm:$0xf]
    %v494 = vld [vmem:[#allocation6 + $0x4] sm:$0xf]
    %v495 = vld [vmem:[#allocation6 + $0x8] sm:$0xf]
    %v496 = vld [vmem:[#allocation6 + $0xc] sm:$0xf]
    %v497 = vld [vmem:[#allocation6 + $0x10] sm:$0xf]
    %v498 = vld [vmem:[#allocation6 + $0x14] sm:$0xf]
    %v499 = vld [vmem:[#allocation6 + $0x18] sm:$0xf]
    %v500 = vld [vmem:[#allocation6 + $0x1c] sm:$0xf]
    %v501 = vld [vmem:[#allocation6 + $0x20] sm:$0xf]
    %v502 = vld [vmem:[#allocation6 + $0x24] sm:$0xf]
    %v503 = vld [vmem:[#allocation6 + $0x28] sm:$0xf]
    %v504 = vld [vmem:[#allocation6 + $0x2c] sm:$0xf]
    %v505 = vld [vmem:[#allocation6 + $0x30] sm:$0xf]
    %v506 = vld [vmem:[#allocation6 + $0x34] sm:$0xf]
    %v507 = vld [vmem:[#allocation6 + $0x38] sm:$0xf]
    %v508 = vld [vmem:[#allocation6 + $0x3c] sm:$0xf]
    %v509 = vld [vmem:[%s2] sm:$0x1]
    %v511 = vperm.slane %v509, 0
    %v529 = vunpack.c.l.b16 %v493
    %v530 = vunpack.c.l.b16 %v494
    %v531 = vunpack.c.l.b16 %v495
    %v532 = vunpack.c.l.b16 %v496
    %v533 = vunpack.c.l.b16 %v497
    %v534 = vunpack.c.l.b16 %v498
    %v535 = vunpack.c.l.b16 %v499
    %v536 = vunpack.c.l.b16 %v500
    %v537 = vunpack.c.l.b16 %v501
    %v538 = vunpack.c.l.b16 %v502
    %v539 = vunpack.c.l.b16 %v503
    %v540 = vunpack.c.l.b16 %v504
    %v541 = vunpack.c.l.b16 %v505
    %v542 = vunpack.c.l.b16 %v506
    %v543 = vunpack.c.l.b16 %v507
    %v544 = vunpack.c.l.b16 %v508
    %v545 = vpack.c.b16 %v530, %v529
    %v546 = vpack.c.b16 %v532, %v531
    %v547 = vpack.c.b16 %v534, %v533
    %v548 = vpack.c.b16 %v536, %v535
    %v549 = vpack.c.b16 %v538, %v537
    %v550 = vpack.c.b16 %v540, %v539
    %v551 = vpack.c.b16 %v542, %v541
    %v552 = vpack.c.b16 %v544, %v543
    %561 = vmatpush.bf16.msra.mxu0 %v552
    %562 = vmatpush.bf16.msra.mxu0 %v551
    %563 = vmatpush.bf16.msra.mxu0 %v550
    %564 = vmatpush.bf16.msra.mxu0 %v549
    %565 = vmatpush.bf16.msra.mxu0 %v548
    %566 = vmatpush.bf16.msra.mxu0 %v547
    %567 = vmatpush.bf16.msra.mxu0 %v546
    %568 = vmatpush.bf16.msra.mxu0 %v545
    %569 = vmatmul.bf16.gmra.mxu0 %v492
    %v570 = vpop.f32.mrf.mxu0
    %v571 = vadd.f32 %v511, %v570
    %v572 = vpop.f32.mrf.mxu0
    %v573 = vadd.f32 %v511, %v572
    %574 = vdwg.mxu0
    %v575 = vmax.f32 %v571, 0.0
    %v576 = vmax.f32 %v573, 0.0
    %v577 = vpack.c.bf16 %v575, %v575
    %v578 = vpack.c.bf16 %v576, %v576
    %579 = vst [vmem:[#allocation2 + $0xc] sm:$0xf] %v577
    %580 = vst [vmem:[#allocation2 + $0x1c] sm:$0xf] %v578
    %v581 = vld [vmem:[#allocation2] sm:$0xff]
    %v582 = vld [vmem:[#allocation2 + $0x8] sm:$0xff]
    %v583 = vld [vmem:[#allocation2 + $0x10] sm:$0xff]
    %v584 = vld [vmem:[#allocation2 + $0x18] sm:$0xff]
    %v585 = vld [vmem:[#allocation8] sm:$0xff]
    %v586 = vld [vmem:[#allocation8 + $0x8] sm:$0xff]
    %v587 = vld [vmem:[#allocation8 + $0x10] sm:$0xff]
    %v588 = vld [vmem:[#allocation8 + $0x18] sm:$0xff]
    %v589 = vld [vmem:[#allocation8 + $0x20] sm:$0xff]
    %v590 = vld [vmem:[#allocation8 + $0x28] sm:$0xff]
    %v591 = vld [vmem:[#allocation8 + $0x30] sm:$0xff]
    %v592 = vld [vmem:[#allocation8 + $0x38] sm:$0xff]
    %v593 = vld [vmem:[#allocation8 + $0x40] sm:$0xff]
    %v594 = vld [vmem:[#allocation8 + $0x48] sm:$0xff]
    %v595 = vld [vmem:[#allocation8 + $0x50] sm:$0xff]
    %v596 = vld [vmem:[#allocation8 + $0x58] sm:$0xff]
    %v597 = vld [vmem:[#allocation8 + $0x60] sm:$0xff]
    %v598 = vld [vmem:[#allocation8 + $0x68] sm:$0xff]
    %v599 = vld [vmem:[#allocation8 + $0x70] sm:$0xff]
    %v600 = vld [vmem:[#allocation8 + $0x78] sm:$0xff]
    %v601 = vld [vmem:[#allocation8 + $0x80] sm:$0xff]
    %v602 = vld [vmem:[#allocation8 + $0x88] sm:$0xff]
    %v603 = vld [vmem:[#allocation8 + $0x90] sm:$0xff]
    %v604 = vld [vmem:[#allocation8 + $0x98] sm:$0xff]
    %v605 = vld [vmem:[#allocation8 + $0xa0] sm:$0xff]
    %v606 = vld [vmem:[#allocation8 + $0xa8] sm:$0xff]
    %v607 = vld [vmem:[#allocation8 + $0xb0] sm:$0xff]
    %v608 = vld [vmem:[#allocation8 + $0xb8] sm:$0xff]
    %v609 = vld [vmem:[#allocation8 + $0xc0] sm:$0xff]
    %v610 = vld [vmem:[#allocation8 + $0xc8] sm:$0xff]
    %v611 = vld [vmem:[#allocation8 + $0xd0] sm:$0xff]
    %v612 = vld [vmem:[#allocation8 + $0xd8] sm:$0xff]
    %v613 = vld [vmem:[#allocation8 + $0xe0] sm:$0xff]
    %v614 = vld [vmem:[#allocation8 + $0xe8] sm:$0xff]
    %v615 = vld [vmem:[#allocation8 + $0xf0] sm:$0xff]
    %v616 = vld [vmem:[#allocation8 + $0xf8] sm:$0xff]
    %v617 = vld [vmem:[#allocation8 + $0x100] sm:$0xff]
    %v618 = vld [vmem:[#allocation8 + $0x108] sm:$0xff]
    %v619 = vld [vmem:[#allocation8 + $0x110] sm:$0xff]
    %v620 = vld [vmem:[#allocation8 + $0x118] sm:$0xff]
    %v621 = vld [vmem:[#allocation8 + $0x120] sm:$0xff]
    %v622 = vld [vmem:[#allocation8 + $0x128] sm:$0xff]
    %v623 = vld [vmem:[#allocation8 + $0x130] sm:$0xff]
    %v624 = vld [vmem:[#allocation8 + $0x138] sm:$0xff]
    %v625 = vld [vmem:[#allocation8 + $0x140] sm:$0xff]
    %v626 = vld [vmem:[#allocation8 + $0x148] sm:$0xff]
    %v627 = vld [vmem:[#allocation8 + $0x150] sm:$0xff]
    %v628 = vld [vmem:[#allocation8 + $0x158] sm:$0xff]
    %v629 = vld [vmem:[#allocation8 + $0x160] sm:$0xff]
    %v630 = vld [vmem:[#allocation8 + $0x168] sm:$0xff]
    %v631 = vld [vmem:[#allocation8 + $0x170] sm:$0xff]
    %v632 = vld [vmem:[#allocation8 + $0x178] sm:$0xff]
    %v633 = vld [vmem:[#allocation8 + $0x180] sm:$0xff]
    %v634 = vld [vmem:[#allocation8 + $0x188] sm:$0xff]
    %v635 = vld [vmem:[#allocation8 + $0x190] sm:$0xff]
    %v636 = vld [vmem:[#allocation8 + $0x198] sm:$0xff]
    %v637 = vld [vmem:[#allocation8 + $0x1a0] sm:$0xff]
    %v638 = vld [vmem:[#allocation8 + $0x1a8] sm:$0xff]
    %v639 = vld [vmem:[#allocation8 + $0x1b0] sm:$0xff]
    %v640 = vld [vmem:[#allocation8 + $0x1b8] sm:$0xff]
    %v641 = vld [vmem:[#allocation8 + $0x1c0] sm:$0xff]
    %v642 = vld [vmem:[#allocation8 + $0x1c8] sm:$0xff]
    %v643 = vld [vmem:[#allocation8 + $0x1d0] sm:$0xff]
    %v644 = vld [vmem:[#allocation8 + $0x1d8] sm:$0xff]
    %v645 = vld [vmem:[#allocation8 + $0x1e0] sm:$0xff]
    %v646 = vld [vmem:[#allocation8 + $0x1e8] sm:$0xff]
    %v647 = vld [vmem:[#allocation8 + $0x1f0] sm:$0xff]
    %v648 = vld [vmem:[#allocation8 + $0x1f8] sm:$0xff]
    %v649 = vld [vmem:[%s4] sm:$0x3]
    %v651 = vperm.slane %v649, 0
    %v652 = vperm.slane %v649, 1
    %v659 = vunpack.c.l.b16 %v581
    %v660 = vunpack.c.h.b16 %v581
    %v661 = vunpack.c.l.b16 %v582
    %v662 = vunpack.c.h.b16 %v582
    %v663 = vunpack.c.l.b16 %v583
    %v664 = vunpack.c.h.b16 %v583
    %v665 = vunpack.c.l.b16 %v584
    %v666 = vunpack.c.h.b16 %v584
    %v667 = vpack.c.b16 %v663, %v659
    %v668 = vpack.c.b16 %v664, %v660
    %v669 = vpack.c.b16 %v665, %v661
    %v670 = vpack.c.b16 %v666, %v662
    %v739 = vunpack.c.l.b16 %v585
    %v740 = vunpack.c.h.b16 %v585
    %v741 = vunpack.c.l.b16 %v586
    %v742 = vunpack.c.h.b16 %v586
    %v743 = vunpack.c.l.b16 %v587
    %v744 = vunpack.c.h.b16 %v587
    %v745 = vunpack.c.l.b16 %v588
    %v746 = vunpack.c.h.b16 %v588
    %v747 = vunpack.c.l.b16 %v589
    %v748 = vunpack.c.h.b16 %v589
    %v749 = vunpack.c.l.b16 %v590
    %v750 = vunpack.c.h.b16 %v590
    %v751 = vunpack.c.l.b16 %v591
    %v752 = vunpack.c.h.b16 %v591
    %v753 = vunpack.c.l.b16 %v592
    %v754 = vunpack.c.h.b16 %v592
    %v755 = vunpack.c.l.b16 %v593
    %v756 = vunpack.c.h.b16 %v593
    %v757 = vunpack.c.l.b16 %v594
    %v758 = vunpack.c.h.b16 %v594
    %v759 = vunpack.c.l.b16 %v595
    %v760 = vunpack.c.h.b16 %v595
    %v761 = vunpack.c.l.b16 %v596
    %v762 = vunpack.c.h.b16 %v596
    %v763 = vunpack.c.l.b16 %v597
    %v764 = vunpack.c.h.b16 %v597
    %v765 = vunpack.c.l.b16 %v598
    %v766 = vunpack.c.h.b16 %v598
    %v767 = vunpack.c.l.b16 %v599
    %v768 = vunpack.c.h.b16 %v599
    %v769 = vunpack.c.l.b16 %v600
    %v770 = vunpack.c.h.b16 %v600
    %v771 = vunpack.c.l.b16 %v601
    %v772 = vunpack.c.h.b16 %v601
    %v773 = vunpack.c.l.b16 %v602
    %v774 = vunpack.c.h.b16 %v602
    %v775 = vunpack.c.l.b16 %v603
    %v776 = vunpack.c.h.b16 %v603
    %v777 = vunpack.c.l.b16 %v604
    %v778 = vunpack.c.h.b16 %v604
    %v779 = vunpack.c.l.b16 %v605
    %v780 = vunpack.c.h.b16 %v605
    %v781 = vunpack.c.l.b16 %v606
    %v782 = vunpack.c.h.b16 %v606
    %v783 = vunpack.c.l.b16 %v607
    %v784 = vunpack.c.h.b16 %v607
    %v785 = vunpack.c.l.b16 %v608
    %v786 = vunpack.c.h.b16 %v608
    %v787 = vunpack.c.l.b16 %v609
    %v788 = vunpack.c.h.b16 %v609
    %v789 = vunpack.c.l.b16 %v610
    %v790 = vunpack.c.h.b16 %v610
    %v791 = vunpack.c.l.b16 %v611
    %v792 = vunpack.c.h.b16 %v611
    %v793 = vunpack.c.l.b16 %v612
    %v794 = vunpack.c.h.b16 %v612
    %v795 = vunpack.c.l.b16 %v613
    %v796 = vunpack.c.h.b16 %v613
    %v797 = vunpack.c.l.b16 %v614
    %v798 = vunpack.c.h.b16 %v614
    %v799 = vunpack.c.l.b16 %v615
    %v800 = vunpack.c.h.b16 %v615
    %v801 = vunpack.c.l.b16 %v616
    %v802 = vunpack.c.h.b16 %v616
    %v803 = vunpack.c.l.b16 %v617
    %v804 = vunpack.c.h.b16 %v617
    %v805 = vunpack.c.l.b16 %v618
    %v806 = vunpack.c.h.b16 %v618
    %v807 = vunpack.c.l.b16 %v619
    %v808 = vunpack.c.h.b16 %v619
    %v809 = vunpack.c.l.b16 %v620
    %v810 = vunpack.c.h.b16 %v620
    %v811 = vunpack.c.l.b16 %v621
    %v812 = vunpack.c.h.b16 %v621
    %v813 = vunpack.c.l.b16 %v622
    %v814 = vunpack.c.h.b16 %v622
    %v815 = vunpack.c.l.b16 %v623
    %v816 = vunpack.c.h.b16 %v623
    %v817 = vunpack.c.l.b16 %v624
    %v818 = vunpack.c.h.b16 %v624
    %v819 = vunpack.c.l.b16 %v625
    %v820 = vunpack.c.h.b16 %v625
    %v821 = vunpack.c.l.b16 %v626
    %v822 = vunpack.c.h.b16 %v626
    %v823 = vunpack.c.l.b16 %v627
    %v824 = vunpack.c.h.b16 %v627
    %v825 = vunpack.c.l.b16 %v628
    %v826 = vunpack.c.h.b16 %v628
    %v827 = vunpack.c.l.b16 %v629
    %v828 = vunpack.c.h.b16 %v629
    %v829 = vunpack.c.l.b16 %v630
    %v830 = vunpack.c.h.b16 %v630
    %v831 = vunpack.c.l.b16 %v631
    %v832 = vunpack.c.h.b16 %v631
    %v833 = vunpack.c.l.b16 %v632
    %v834 = vunpack.c.h.b16 %v632
    %v835 = vunpack.c.l.b16 %v633
    %v836 = vunpack.c.h.b16 %v633
    %v837 = vunpack.c.l.b16 %v634
    %v838 = vunpack.c.h.b16 %v634
    %v839 = vunpack.c.l.b16 %v635
    %v840 = vunpack.c.h.b16 %v635
    %v841 = vunpack.c.l.b16 %v636
    %v842 = vunpack.c.h.b16 %v636
    %v843 = vunpack.c.l.b16 %v637
    %v844 = vunpack.c.h.b16 %v637
    %v845 = vunpack.c.l.b16 %v638
    %v846 = vunpack.c.h.b16 %v638
    %v847 = vunpack.c.l.b16 %v639
    %v848 = vunpack.c.h.b16 %v639
    %v849 = vunpack.c.l.b16 %v640
    %v850 = vunpack.c.h.b16 %v640
    %v851 = vunpack.c.l.b16 %v641
    %v852 = vunpack.c.h.b16 %v641
    %v853 = vunpack.c.l.b16 %v642
    %v854 = vunpack.c.h.b16 %v642
    %v855 = vunpack.c.l.b16 %v643
    %v856 = vunpack.c.h.b16 %v643
    %v857 = vunpack.c.l.b16 %v644
    %v858 = vunpack.c.h.b16 %v644
    %v859 = vunpack.c.l.b16 %v645
    %v860 = vunpack.c.h.b16 %v645
    %v861 = vunpack.c.l.b16 %v646
    %v862 = vunpack.c.h.b16 %v646
    %v863 = vunpack.c.l.b16 %v647
    %v864 = vunpack.c.h.b16 %v647
    %v865 = vunpack.c.l.b16 %v648
    %v866 = vunpack.c.h.b16 %v648
    %v867 = vpack.c.b16 %v741, %v739
    %v868 = vpack.c.b16 %v742, %v740
    %v869 = vpack.c.b16 %v745, %v743
    %v870 = vpack.c.b16 %v746, %v744
    %v871 = vpack.c.b16 %v749, %v747
    %v872 = vpack.c.b16 %v750, %v748
    %v873 = vpack.c.b16 %v753, %v751
    %v874 = vpack.c.b16 %v754, %v752
    %v875 = vpack.c.b16 %v757, %v755
    %v876 = vpack.c.b16 %v758, %v756
    %v877 = vpack.c.b16 %v761, %v759
    %v878 = vpack.c.b16 %v762, %v760
    %v879 = vpack.c.b16 %v765, %v763
    %v880 = vpack.c.b16 %v766, %v764
    %v881 = vpack.c.b16 %v769, %v767
    %v882 = vpack.c.b16 %v770, %v768
    %v883 = vpack.c.b16 %v773, %v771
    %v884 = vpack.c.b16 %v774, %v772
    %v885 = vpack.c.b16 %v777, %v775
    %v886 = vpack.c.b16 %v778, %v776
    %v887 = vpack.c.b16 %v781, %v779
    %v888 = vpack.c.b16 %v782, %v780
    %v889 = vpack.c.b16 %v785, %v783
    %v890 = vpack.c.b16 %v786, %v784
    %v891 = vpack.c.b16 %v789, %v787
    %v892 = vpack.c.b16 %v790, %v788
    %v893 = vpack.c.b16 %v793, %v791
    %v894 = vpack.c.b16 %v794, %v792
    %v895 = vpack.c.b16 %v797, %v795
    %v896 = vpack.c.b16 %v798, %v796
    %v897 = vpack.c.b16 %v801, %v799
    %v898 = vpack.c.b16 %v802, %v800
    %v899 = vpack.c.b16 %v805, %v803
    %v900 = vpack.c.b16 %v806, %v804
    %v901 = vpack.c.b16 %v809, %v807
    %v902 = vpack.c.b16 %v810, %v808
    %v903 = vpack.c.b16 %v813, %v811
    %v904 = vpack.c.b16 %v814, %v812
    %v905 = vpack.c.b16 %v817, %v815
    %v906 = vpack.c.b16 %v818, %v816
    %v907 = vpack.c.b16 %v821, %v819
    %v908 = vpack.c.b16 %v822, %v820
    %v909 = vpack.c.b16 %v825, %v823
    %v910 = vpack.c.b16 %v826, %v824
    %v911 = vpack.c.b16 %v829, %v827
    %v912 = vpack.c.b16 %v830, %v828
    %v913 = vpack.c.b16 %v833, %v831
    %v914 = vpack.c.b16 %v834, %v832
    %v915 = vpack.c.b16 %v837, %v835
    %v916 = vpack.c.b16 %v838, %v836
    %v917 = vpack.c.b16 %v841, %v839
    %v918 = vpack.c.b16 %v842, %v840
    %v919 = vpack.c.b16 %v845, %v843
    %v920 = vpack.c.b16 %v846, %v844
    %v921 = vpack.c.b16 %v849, %v847
    %v922 = vpack.c.b16 %v850, %v848
    %v923 = vpack.c.b16 %v853, %v851
    %v924 = vpack.c.b16 %v854, %v852
    %v925 = vpack.c.b16 %v857, %v855
    %v926 = vpack.c.b16 %v858, %v856
    %v927 = vpack.c.b16 %v861, %v859
    %v928 = vpack.c.b16 %v862, %v860
    %v929 = vpack.c.b16 %v865, %v863
    %v930 = vpack.c.b16 %v866, %v864
    %995 = vmatpush.bf16.msra.mxu0 %v881
    %996 = vmatpush.bf16.msra.mxu0 %v879
    %997 = vmatpush.bf16.msra.mxu0 %v877
    %998 = vmatpush.bf16.msra.mxu0 %v875
    %999 = vmatpush.bf16.msra.mxu0 %v873
    %1000 = vmatpush.bf16.msra.mxu0 %v871
    %1001 = vmatpush.bf16.msra.mxu0 %v869
    %1002 = vmatpush.bf16.msra.mxu0 %v867
    %1003 = vmatmul.bf16.gmra.mxu0 %v667
    %v1004 = vpop.f32.mrf.mxu0
    %v1005 = vadd.f32 %v651, %v1004
    %v1006 = vpop.f32.mrf.mxu0
    %v1007 = vadd.f32 %v651, %v1006
    %1008 = vdwg.mxu0
    %1009 = vmatpush.bf16.msra.mxu0 %v897
    %1010 = vmatpush.bf16.msra.mxu0 %v895
    %1011 = vmatpush.bf16.msra.mxu0 %v893
    %1012 = vmatpush.bf16.msra.mxu0 %v891
    %1013 = vmatpush.bf16.msra.mxu0 %v889
    %1014 = vmatpush.bf16.msra.mxu0 %v887
    %1015 = vmatpush.bf16.msra.mxu0 %v885
    %1016 = vmatpush.bf16.msra.mxu0 %v883
    %1017 = vmatmul.bf16.gmra.mxu0 %v668
    %v1018 = vpop.f32.mrf.mxu0
    %v1019 = vadd.f32 %v1005, %v1018
    %v1020 = vpop.f32.mrf.mxu0
    %v1021 = vadd.f32 %v1007, %v1020
    %1022 = vdwg.mxu0
    %1023 = vmatpush.bf16.msra.mxu0 %v913
    %1024 = vmatpush.bf16.msra.mxu0 %v911
    %1025 = vmatpush.bf16.msra.mxu0 %v909
    %1026 = vmatpush.bf16.msra.mxu0 %v907
    %1027 = vmatpush.bf16.msra.mxu0 %v905
    %1028 = vmatpush.bf16.msra.mxu0 %v903
    %1029 = vmatpush.bf16.msra.mxu0 %v901
    %1030 = vmatpush.bf16.msra.mxu0 %v899
    %1031 = vmatmul.bf16.gmra.mxu0 %v669
    %v1032 = vpop.f32.mrf.mxu0
    %v1033 = vadd.f32 %v1019, %v1032
    %v1034 = vpop.f32.mrf.mxu0
    %v1035 = vadd.f32 %v1021, %v1034
    %1036 = vdwg.mxu0
    %1037 = vmatpush.bf16.msra.mxu0 %v929
    %1038 = vmatpush.bf16.msra.mxu0 %v927
    %1039 = vmatpush.bf16.msra.mxu0 %v925
    %1040 = vmatpush.bf16.msra.mxu0 %v923
    %1041 = vmatpush.bf16.msra.mxu0 %v921
    %1042 = vmatpush.bf16.msra.mxu0 %v919
    %1043 = vmatpush.bf16.msra.mxu0 %v917
    %1044 = vmatpush.bf16.msra.mxu0 %v915
    %1045 = vmatmul.bf16.gmra.mxu0 %v670
    %v1046 = vpop.f32.mrf.mxu0
    %v1047 = vadd.f32 %v1033, %v1046
    %v1048 = vpop.f32.mrf.mxu0
    %v1049 = vadd.f32 %v1035, %v1048
    %1050 = vdwg.mxu0
    %1051 = vmatpush.bf16.msra.mxu0 %v882
    %1052 = vmatpush.bf16.msra.mxu0 %v880
    %1053 = vmatpush.bf16.msra.mxu0 %v878
    %1054 = vmatpush.bf16.msra.mxu0 %v876
    %1055 = vmatpush.bf16.msra.mxu0 %v874
    %1056 = vmatpush.bf16.msra.mxu0 %v872
    %1057 = vmatpush.bf16.msra.mxu0 %v870
    %1058 = vmatpush.bf16.msra.mxu0 %v868
    %1059 = vmatmul.bf16.gmra.mxu0 %v667
    %v1060 = vpop.f32.mrf.mxu0
    %v1061 = vadd.f32 %v652, %v1060
    %v1062 = vpop.f32.mrf.mxu0
    %v1063 = vadd.f32 %v652, %v1062
    %1064 = vdwg.mxu0
    %1065 = vmatpush.bf16.msra.mxu0 %v898
    %1066 = vmatpush.bf16.msra.mxu0 %v896
    %1067 = vmatpush.bf16.msra.mxu0 %v894
    %1068 = vmatpush.bf16.msra.mxu0 %v892
    %1069 = vmatpush.bf16.msra.mxu0 %v890
    %1070 = vmatpush.bf16.msra.mxu0 %v888
    %1071 = vmatpush.bf16.msra.mxu0 %v886
    %1072 = vmatpush.bf16.msra.mxu0 %v884
    %1073 = vmatmul.bf16.gmra.mxu0 %v668
    %v1074 = vpop.f32.mrf.mxu0
    %v1075 = vadd.f32 %v1061, %v1074
    %v1076 = vpop.f32.mrf.mxu0
    %v1077 = vadd.f32 %v1063, %v1076
    %1078 = vdwg.mxu0
    %1079 = vmatpush.bf16.msra.mxu0 %v914
    %1080 = vmatpush.bf16.msra.mxu0 %v912
    %1081 = vmatpush.bf16.msra.mxu0 %v910
    %1082 = vmatpush.bf16.msra.mxu0 %v908
    %1083 = vmatpush.bf16.msra.mxu0 %v906
    %1084 = vmatpush.bf16.msra.mxu0 %v904
    %1085 = vmatpush.bf16.msra.mxu0 %v902
    %1086 = vmatpush.bf16.msra.mxu0 %v900
    %1087 = vmatmul.bf16.gmra.mxu0 %v669
    %v1088 = vpop.f32.mrf.mxu0
    %v1089 = vadd.f32 %v1075, %v1088
    %v1090 = vpop.f32.mrf.mxu0
    %v1091 = vadd.f32 %v1077, %v1090
    %1092 = vdwg.mxu0
    %1093 = vmatpush.bf16.msra.mxu0 %v930
    %1094 = vmatpush.bf16.msra.mxu0 %v928
    %1095 = vmatpush.bf16.msra.mxu0 %v926
    %1096 = vmatpush.bf16.msra.mxu0 %v924
    %1097 = vmatpush.bf16.msra.mxu0 %v922
    %1098 = vmatpush.bf16.msra.mxu0 %v920
    %1099 = vmatpush.bf16.msra.mxu0 %v918
    %1100 = vmatpush.bf16.msra.mxu0 %v916
    %1101 = vmatmul.bf16.gmra.mxu0 %v670
    %v1102 = vpop.f32.mrf.mxu0
    %v1103 = vadd.f32 %v1089, %v1102
    %v1104 = vpop.f32.mrf.mxu0
    %v1105 = vadd.f32 %v1091, %v1104
    %1106 = vdwg.mxu0
    %v1107 = vmax.f32 %v1047, 0.0
    %v1108 = vmax.f32 %v1103, 0.0
    %v1109 = vmax.f32 %v1049, 0.0
    %v1110 = vmax.f32 %v1105, 0.0
    %v1111 = vpack.c.bf16 %v1109, %v1107
    %v1112 = vpack.c.bf16 %v1110, %v1108
    %v1113 = vld [vmem:[#allocation9] sm:$0xf]
    %v1114 = vld [vmem:[#allocation9 + $0x4] sm:$0xf]
    %v1115 = vld [vmem:[#allocation9 + $0x8] sm:$0xf]
    %v1116 = vld [vmem:[#allocation9 + $0xc] sm:$0xf]
    %v1117 = vld [vmem:[#allocation9 + $0x10] sm:$0xf]
    %v1118 = vld [vmem:[#allocation9 + $0x14] sm:$0xf]
    %v1119 = vld [vmem:[#allocation9 + $0x18] sm:$0xf]
    %v1120 = vld [vmem:[#allocation9 + $0x1c] sm:$0xf]
    %v1121 = vld [vmem:[#allocation9 + $0x20] sm:$0xf]
    %v1122 = vld [vmem:[#allocation9 + $0x24] sm:$0xf]
    %v1123 = vld [vmem:[#allocation9 + $0x28] sm:$0xf]
    %v1124 = vld [vmem:[#allocation9 + $0x2c] sm:$0xf]
    %v1125 = vld [vmem:[#allocation9 + $0x30] sm:$0xf]
    %v1126 = vld [vmem:[#allocation9 + $0x34] sm:$0xf]
    %v1127 = vld [vmem:[#allocation9 + $0x38] sm:$0xf]
    %v1128 = vld [vmem:[#allocation9 + $0x3c] sm:$0xf]
    %v1129 = vld [vmem:[#allocation9 + $0x40] sm:$0xf]
    %v1130 = vld [vmem:[#allocation9 + $0x44] sm:$0xf]
    %v1131 = vld [vmem:[#allocation9 + $0x48] sm:$0xf]
    %v1132 = vld [vmem:[#allocation9 + $0x4c] sm:$0xf]
    %v1133 = vld [vmem:[#allocation9 + $0x50] sm:$0xf]
    %v1134 = vld [vmem:[#allocation9 + $0x54] sm:$0xf]
    %v1135 = vld [vmem:[#allocation9 + $0x58] sm:$0xf]
    %v1136 = vld [vmem:[#allocation9 + $0x5c] sm:$0xf]
    %v1137 = vld [vmem:[#allocation9 + $0x60] sm:$0xf]
    %v1138 = vld [vmem:[#allocation9 + $0x64] sm:$0xf]
    %v1139 = vld [vmem:[#allocation9 + $0x68] sm:$0xf]
    %v1140 = vld [vmem:[#allocation9 + $0x6c] sm:$0xf]
    %v1141 = vld [vmem:[#allocation9 + $0x70] sm:$0xf]
    %v1142 = vld [vmem:[#allocation9 + $0x74] sm:$0xf]
    %v1143 = vld [vmem:[#allocation9 + $0x78] sm:$0xf]
    %v1144 = vld [vmem:[#allocation9 + $0x7c] sm:$0xf]
    %v1145 = vld [vmem:[%s6] sm:$0x1]
    %v1147 = vperm.slane %v1145, 0
    %v1181 = vunpack.c.l.b16 %v1113
    %v1182 = vunpack.c.l.b16 %v1114
    %v1183 = vunpack.c.l.b16 %v1115
    %v1184 = vunpack.c.l.b16 %v1116
    %v1185 = vunpack.c.l.b16 %v1117
    %v1186 = vunpack.c.l.b16 %v1118
    %v1187 = vunpack.c.l.b16 %v1119
    %v1188 = vunpack.c.l.b16 %v1120
    %v1189 = vunpack.c.l.b16 %v1121
    %v1190 = vunpack.c.l.b16 %v1122
    %v1191 = vunpack.c.l.b16 %v1123
    %v1192 = vunpack.c.l.b16 %v1124
    %v1193 = vunpack.c.l.b16 %v1125
    %v1194 = vunpack.c.l.b16 %v1126
    %v1195 = vunpack.c.l.b16 %v1127
    %v1196 = vunpack.c.l.b16 %v1128
    %v1197 = vunpack.c.l.b16 %v1129
    %v1198 = vunpack.c.l.b16 %v1130
    %v1199 = vunpack.c.l.b16 %v1131
    %v1200 = vunpack.c.l.b16 %v1132
    %v1201 = vunpack.c.l.b16 %v1133
    %v1202 = vunpack.c.l.b16 %v1134
    %v1203 = vunpack.c.l.b16 %v1135
    %v1204 = vunpack.c.l.b16 %v1136
    %v1205 = vunpack.c.l.b16 %v1137
    %v1206 = vunpack.c.l.b16 %v1138
    %v1207 = vunpack.c.l.b16 %v1139
    %v1208 = vunpack.c.l.b16 %v1140
    %v1209 = vunpack.c.l.b16 %v1141
    %v1210 = vunpack.c.l.b16 %v1142
    %v1211 = vunpack.c.l.b16 %v1143
    %v1212 = vunpack.c.l.b16 %v1144
    %v1213 = vpack.c.b16 %v1182, %v1181
    %v1214 = vpack.c.b16 %v1184, %v1183
    %v1215 = vpack.c.b16 %v1186, %v1185
    %v1216 = vpack.c.b16 %v1188, %v1187
    %v1217 = vpack.c.b16 %v1190, %v1189
    %v1218 = vpack.c.b16 %v1192, %v1191
    %v1219 = vpack.c.b16 %v1194, %v1193
    %v1220 = vpack.c.b16 %v1196, %v1195
    %v1221 = vpack.c.b16 %v1198, %v1197
    %v1222 = vpack.c.b16 %v1200, %v1199
    %v1223 = vpack.c.b16 %v1202, %v1201
    %v1224 = vpack.c.b16 %v1204, %v1203
    %v1225 = vpack.c.b16 %v1206, %v1205
    %v1226 = vpack.c.b16 %v1208, %v1207
    %v1227 = vpack.c.b16 %v1210, %v1209
    %v1228 = vpack.c.b16 %v1212, %v1211
    %1245 = vmatpush.bf16.msra.mxu0 %v1220
    %1246 = vmatpush.bf16.msra.mxu0 %v1219
    %1247 = vmatpush.bf16.msra.mxu0 %v1218
    %1248 = vmatpush.bf16.msra.mxu0 %v1217
    %1249 = vmatpush.bf16.msra.mxu0 %v1216
    %1250 = vmatpush.bf16.msra.mxu0 %v1215
    %1251 = vmatpush.bf16.msra.mxu0 %v1214
    %1252 = vmatpush.bf16.msra.mxu0 %v1213
    %1253 = vmatmul.bf16.gmra.mxu0 %v1111
    %v1254 = vpop.f32.mrf.mxu0
    %v1255 = vadd.f32 %v1147, %v1254
    %v1256 = vpop.f32.mrf.mxu0
    %v1257 = vadd.f32 %v1147, %v1256
    %1258 = vdwg.mxu0
    %1259 = vmatpush.bf16.msra.mxu0 %v1228
    %1260 = vmatpush.bf16.msra.mxu0 %v1227
    %1261 = vmatpush.bf16.msra.mxu0 %v1226
    %1262 = vmatpush.bf16.msra.mxu0 %v1225
    %1263 = vmatpush.bf16.msra.mxu0 %v1224
    %1264 = vmatpush.bf16.msra.mxu0 %v1223
    %1265 = vmatpush.bf16.msra.mxu0 %v1222
    %1266 = vmatpush.bf16.msra.mxu0 %v1221
    %1267 = vmatmul.bf16.gmra.mxu0 %v1112
    %v1268 = vpop.f32.mrf.mxu0
    %v1269 = vadd.f32 %v1255, %v1268
    %v1270 = vpop.f32.mrf.mxu0
    %v1271 = vadd.f32 %v1257, %v1270
    %1272 = vdwg.mxu0
    %1273 = vst [vmem:[#allocation11] sm:$0xff] %v1269
    %1274 = vst [vmem:[#allocation11 + $0x8] sm:$0xff] %v1271
    // Predicated region
    $region46: #{tpu_custom_call.1} parent=1 // pred_check
      _
    $region47: #{tpu_custom_call.1} parent=1 // pred_check_branch
      %1276 = sbr.rel (0) target = $region49
    $region48: #{tpu_custom_call.1} parent=1 // pred_region
      %1278 = vsyncadd [#allocation5], 0
      %s1279 = sshll.u32 [#allocation11], 4
      %s1280 = int_to_ptr.vmem [resolvable:$true] %s1279
      %s1281 = sshll.u32 %s7, 4
      %s1282 = int_to_ptr.hbm [resolvable:$true] %s1281
      %1287 = dma.vmem_to_hbm [thread:$0]  %s1280, 256, %s1282, [#allocation5], 128, 128, 8
    $region49: #{tpu_custom_call.1} parent=1 // pred_fallthru
      _
    // Predicated region
    $region50: #{tpu_custom_call.1} parent=1 // pred_check
      _
    $region51: #{tpu_custom_call.1} parent=1 // pred_check_branch
      %1289 = sbr.rel (0) target = $region53
    $region52: #{tpu_custom_call.1} parent=1 // pred_region
      %1291 = dma.done [#allocation5], 256
    $region53: #{tpu_custom_call.1} parent=1 // pred_fallthru
      _
    %1292 = vsyncpa [#allocation4], 1
    %1293 = vsyncpa [#allocation7], 1
    %1294 = vsyncpa [#allocation10], 1
    %1295 = vsyncpa [#allocation5], 1

</llo_original>
